<compile_context>
chip_gen: v5e
topology: v5e:2x2
jax: 0.10.0
libtpu: 0.0.40
codegen_flags: <defaults>
</compile_context>

<pallas_src>
import functools

import jax
import jax.numpy as jnp
from jax.experimental import pallas as pl
from jax.experimental.pallas import tpu as pltpu


# ----------------------------------------------------------------------------
# Pallas kernel: pointwise (1x1x1) conv as a lane-dense channel matmul + bias.
# ----------------------------------------------------------------------------
def _conv1x1_kernel(x_ref, w_ref, b_ref, o_ref):
    # x: (1, Cin, TS), w: (Cout, Cin), b: (Cout, 1) -> o: (1, Cout, TS)
    y = jnp.dot(w_ref[...], x_ref[0],
                preferred_element_type=jnp.float32)        # (Cout, TS), lanes = spatial
    o_ref[0] = (y + b_ref[...]).astype(o_ref.dtype)        # bias broadcast over lanes


# ----------------------------------------------------------------------------
# Wrapper
# ----------------------------------------------------------------------------
def _pick_spatial_tile(S, max_tile=8192):
    """Largest lane-friendly tile dividing S (use the whole spatial axis if small)."""
    if S <= max_tile:
        return S
    for ts in range(max_tile - max_tile % 128, 127, -128):
        if S % ts == 0:
            return ts
    return S


def out_forward(params, x_ncdhw):
    """Out.forward: nn.Conv3d(in_ch, out_ch, kernel_size=1) on an NCDHW tensor."""
    N, Cin, D, H, W = x_ncdhw.shape
    Cout = params["w"].shape[0]
    w = params["w"].reshape(Cout, Cin)      # PyTorch (Cout, Cin, 1, 1, 1) -> (Cout, Cin)
    b = params["b"].reshape(Cout, 1)

    S = D * H * W
    TS = _pick_spatial_tile(S)
    x = x_ncdhw.reshape(N, Cin, S)          # free reshape, stays channels-first

    y = pl.pallas_call(
        _conv1x1_kernel,
        out_shape=jax.ShapeDtypeStruct((N, Cout, S), jnp.float32),
        grid=(N, S // TS),
        in_specs=[pl.BlockSpec((1, Cin, TS), lambda n, s: (n, 0, s)),
                  pl.BlockSpec((Cout, Cin), lambda n, s: (0, 0)),
                  pl.BlockSpec((Cout, 1), lambda n, s: (0, 0))],
        out_specs=pl.BlockSpec((1, Cout, TS), lambda n, s: (n, 0, s)),
        compiler_params=pltpu.CompilerParams(
            dimension_semantics=("parallel", "parallel")),
    )(x, w, b)

    return y.reshape(N, Cout, D, H, W)


# ----------------------------------------------------------------------------
# Main
# ----------------------------------------------------------------------------
if __name__ == "__main__":
    N, in_ch, out_ch = 2, 4, 2
    D = H = W = 16

    key = jax.random.PRNGKey(0)
    k_w, k_b, k_x = jax.random.split(key, 3)

    params = dict(
        # nn.Conv3d(in_ch, out_ch, kernel_size=1): weight (Cout, Cin, 1, 1, 1), bias (Cout,)
        w=0.1 * jax.random.normal(k_w, (out_ch, in_ch, 1, 1, 1), jnp.float32),
        b=0.1 * jax.random.normal(k_b, (out_ch,), jnp.float32),
    )
    x = jax.random.normal(k_x, (N, in_ch, D, H, W), jnp.float32)

    out = jax.jit(functools.partial(out_forward, params))(x)
    out = jax.block_until_ready(out)

    assert out.shape == (N, out_ch, D, H, W), out.shape
    assert bool(jnp.isfinite(out).all())

    # Reference check: 1x1x1 conv == per-voxel channel matmul + bias.
    ref = (jnp.einsum("oc,ncs->nos",
                      params["w"].reshape(out_ch, in_ch),
                      x.reshape(N, in_ch, D * H * W))
           + params["b"].reshape(1, out_ch, 1)).reshape(N, out_ch, D, H, W)
    assert bool(jnp.allclose(out, ref, atol=1e-5, rtol=1e-5))

    print("KERNEL_OK")
</pallas_src>

<mosaic_0001>
module attributes {stable_mosaic.version = 11 : i64} {
  func.func @_conv1x1_kernel(%arg0: i32, %arg1: i32, %arg2: memref<1x4x4096xf32, #tpu.memory_space<vmem>>, %arg3: memref<2x4xf32, #tpu.memory_space<vmem>>, %arg4: memref<2x1xf32, #tpu.memory_space<vmem>>, %arg5: memref<1x2x4096xf32, #tpu.memory_space<vmem>>) attributes {dimension_semantics = [#tpu.dimension_semantics<parallel>, #tpu.dimension_semantics<parallel>], iteration_bounds = array<i64: 2, 1>, scalar_prefetch = 0 : i64, scratch_operands = 0 : i64, tpu.core_type = #tpu.core_type<tc>, window_params = [{transform_indices = @transform_0, window_bounds = array<i64: 1, 4, 4096>}, {pipeline_mode = #tpu.pipeline_mode<synchronous>, transform_indices = @transform_1, window_bounds = array<i64: 2, 4>}, {pipeline_mode = #tpu.pipeline_mode<synchronous>, transform_indices = @transform_2, window_bounds = array<i64: 2, 1>}, {transform_indices = @transform_3, window_bounds = array<i64: 1, 2, 4096>}]} {
    %c0 = arith.constant 0 : index
    %c0_0 = arith.constant 0 : index
    %0 = vector.load %arg3[%c0, %c0_0] : memref<2x4xf32, #tpu.memory_space<vmem>>, vector<2x4xf32>
    %c0_1 = arith.constant 0 : index
    %c0_2 = arith.constant 0 : index
    %c0_3 = arith.constant 0 : index
    %1 = vector.load %arg2[%c0_1, %c0_2, %c0_3] : memref<1x4x4096xf32, #tpu.memory_space<vmem>>, vector<1x4x4096xf32>
    %2 = vector.shape_cast %1 : vector<1x4x4096xf32> to vector<4x4096xf32>
    %cst = arith.constant dense<0.000000e+00> : vector<2x4096xf32>
    %3 = tpu.matmul %0, %2, %cst {dimension_numbers = #tpu.dot_dimension_numbers<[1], [0], [0], [1], [0, 0, 1, 1], [], []>} : vector<2x4xf32>, vector<4x4096xf32>, vector<2x4096xf32> -> vector<2x4096xf32>
    %c0_4 = arith.constant 0 : index
    %c0_5 = arith.constant 0 : index
    %4 = vector.load %arg4[%c0_4, %c0_5] : memref<2x1xf32, #tpu.memory_space<vmem>>, vector<2x1xf32>
    %5 = vector.broadcast %4 : vector<2x1xf32> to vector<2x4096xf32>
    %6 = arith.addf %3, %5 : vector<2x4096xf32>
    %c0_6 = arith.constant 0 : index
    %c0_7 = arith.constant 0 : index
    %c0_8 = arith.constant 0 : index
    %7 = vector.load %arg5[%c0_6, %c0_7, %c0_8] : memref<1x2x4096xf32, #tpu.memory_space<vmem>>, vector<1x2x4096xf32>
    %8 = vector.shape_cast %7 : vector<1x2x4096xf32> to vector<2x4096xf32>
    %9 = vector.shape_cast %6 : vector<2x4096xf32> to vector<1x2x4096xf32>
    tpu.vector_store %arg5[%c0_6, %c0_7, %c0_8], %9 {strides = array<i32>} : memref<1x2x4096xf32, #tpu.memory_space<vmem>>, vector<1x2x4096xf32>,
    return
  }
  func.func @transform_0(%arg0: i32, %arg1: i32) -> (i32, i32, i32) {
    %c0_i32 = arith.constant 0 : i32
    %c0_i32_0 = arith.constant 0 : i32
    return %arg0, %c0_i32, %arg1 : i32, i32, i32
  }
  func.func @transform_1(%arg0: i32, %arg1: i32) -> (i32, i32) {
    %c0_i32 = arith.constant 0 : i32
    %c0_i32_0 = arith.constant 0 : i32
    %c0_i32_1 = arith.constant 0 : i32
    return %c0_i32, %c0_i32_0 : i32, i32
  }
  func.func @transform_2(%arg0: i32, %arg1: i32) -> (i32, i32) {
    %c0_i32 = arith.constant 0 : i32
    %c0_i32_0 = arith.constant 0 : i32
    %c0_i32_1 = arith.constant 0 : i32
    return %c0_i32, %c0_i32_0 : i32, i32
  }
  func.func @transform_3(%arg0: i32, %arg1: i32) -> (i32, i32, i32) {
    %c0_i32 = arith.constant 0 : i32
    %c0_i32_0 = arith.constant 0 : i32
    return %arg0, %c0_i32, %arg1 : i32, i32, i32
  }
}

</mosaic_0001>

<llo_original>
// kernel: out_forward.1
$region0: #{out_forward.1}
  #allocation0 [shape = 'u32[]', space=smem, size = 0x4, offset = 0x4, fixed_abs, tag = 'smem constant byte address 0x4 - core index']
  #allocation1 [shape = 'u32[72,128]{1,0:T(1,128)}', space=vmem, size = 0x9000, scoped, tag = 'internal scratch']
  %s0 = inlined_call_operand.vmem [shape: f32[2,4,4096], index: 0, kind: input, shape index: {}]
  %s1 = inlined_call_operand.vmem [shape: f32[2,4], index: 1, kind: input, shape index: {}]
  %s2 = inlined_call_operand.vmem [shape: f32[2,1], index: 2, kind: input, shape index: {}]
  %s3 = inlined_call_operand.vmem [shape: f32[2,2,4096], index: 3, kind: output, shape index: {}]
  %s4 = sld [smem:[#allocation0]]
  $region45: #{out_forward.1} parent=0
    _
  %s6 = ssub.s32 1, %s4
  %s7 = scalar_select 0, %s6, %s4
  loop: start=0, step=1, limit=4
  $region2: #{out_forward.1} parent=0 // loop_pre_header
    _
  $region3: #{out_forward.1} parent=0 // loop_header
    %s9 = sphi 0, %s13
    %p10 = scmp.ge.s32.totalorder %s9, 4
    %s16 = sphi 0, %s28
    %s17 = sphi 0, %s24
    %s18 = sphi 0, %s16
    %s19 = sphi 0, %s17
    %s20 = sphi 0, %s18
    %s21 = sphi 0, %s19
    %s33 = sphi 0, %s35
    %s36 = sphi 0, %s33
    %s37 = sphi 0, %s36
    %s53 = sphi 0, %s37
    %s57 = sphi 0, %s57
    %s59 = sphi 0, %s57
    %s60 = sphi 0, %s59
    %s74 = sphi 0, %s60
    %s78 = sphi 0, %s78
    %s80 = sphi 0, %s78
    %s81 = sphi 0, %s80
    %s95 = sphi 0, %s81
    %s103 = sphi 0, %s105
    %s106 = sphi 0, %s103
    %s107 = sphi 0, %s106
    %s123 = sphi 0, %s107
  $region4: #{out_forward.1} parent=0 // loop_header_branch
    %12 = sbr.rel (%p10) target = $region8
  $region5: #{out_forward.1} parent=0 // loop_body
    %s14 = ssub.s32 %s9, 1
    %s15 = ssub.s32 %s9, 2
    %s22 = sadd.s32 1, %s17
    %p23 = scmp.ge.s32.totalorder %s22, 1
    %s24 = scalar_select %p23, 0, %s22
    %s25 = sadd.s32 1, %s16
    %s26 = scalar_select %p23, %s25, %s16
    %p27 = scmp.ge.s32.totalorder %s26, 2
    %s28 = scalar_select %p27, 0, %s26
    %s29 = ssub.s32 %s16, %s28
    %s30 = ssub.s32 %s17, %s24
    %s31 = sor.u32 %s29, %s30
    %p32 = scmp.eq.s32.totalorder %s31, 0
    %s34 = sadd.s32 %s33, 1
    %s35 = scalar_select %p32, %s33, %s34
    %p38 = pneg %p32
    %p39 = scmp.eq.s32.totalorder %s9, 1
    %p40 = por %p38, %p39
    %p41 = scmp.ne.s32.totalorder %s33, %s36
    %p42 = scmp.eq.s32.totalorder %s9, 0
    %p43 = por %p41, %p42
    %p44 = scmp.ne.s32.totalorder %s33, %s36
    %p45 = scmp.eq.s32.totalorder %s14, 1
    %p46 = por %p44, %p45
    %p47 = scmp.ne.s32.totalorder %s36, %s37
    %p48 = scmp.eq.s32.totalorder %s14, 0
    %p49 = por %p47, %p48
    %p50 = scmp.ne.s32.totalorder %s36, %s37
    %p51 = scmp.eq.s32.totalorder %s15, 1
    %p52 = por %p50, %p51
    %p54 = scmp.ne.s32.totalorder %s37, %s53
    %p55 = scmp.eq.s32.totalorder %s15, 0
    %p56 = por %p54, %p55
    %s58 = sadd.s32 %s57, 1
    %p61 = scmp.eq.s32.totalorder %s9, 1
    %p62 = scmp.ne.s32.totalorder %s57, %s59
    %p63 = scmp.eq.s32.totalorder %s9, 0
    %p64 = por %p62, %p63
    %p65 = scmp.ne.s32.totalorder %s57, %s59
    %p66 = scmp.eq.s32.totalorder %s14, 1
    %p67 = por %p65, %p66
    %p68 = scmp.ne.s32.totalorder %s59, %s60
    %p69 = scmp.eq.s32.totalorder %s14, 0
    %p70 = por %p68, %p69
    %p71 = scmp.ne.s32.totalorder %s59, %s60
    %p72 = scmp.eq.s32.totalorder %s15, 1
    %p73 = por %p71, %p72
    %p75 = scmp.ne.s32.totalorder %s60, %s74
    %p76 = scmp.eq.s32.totalorder %s15, 0
    %p77 = por %p75, %p76
    %s79 = sadd.s32 %s78, 1
    %p82 = scmp.eq.s32.totalorder %s9, 1
    %p83 = scmp.ne.s32.totalorder %s78, %s80
    %p84 = scmp.eq.s32.totalorder %s9, 0
    %p85 = por %p83, %p84
    %p86 = scmp.ne.s32.totalorder %s78, %s80
    %p87 = scmp.eq.s32.totalorder %s14, 1
    %p88 = por %p86, %p87
    %p89 = scmp.ne.s32.totalorder %s80, %s81
    %p90 = scmp.eq.s32.totalorder %s14, 0
    %p91 = por %p89, %p90
    %p92 = scmp.ne.s32.totalorder %s80, %s81
    %p93 = scmp.eq.s32.totalorder %s15, 1
    %p94 = por %p92, %p93
    %p96 = scmp.ne.s32.totalorder %s81, %s95
    %p97 = scmp.eq.s32.totalorder %s15, 0
    %p98 = por %p96, %p97
    %s99 = ssub.s32 %s16, %s28
    %s100 = ssub.s32 %s17, %s24
    %s101 = sor.u32 %s99, %s100
    %p102 = scmp.eq.s32.totalorder %s101, 0
    %s104 = sadd.s32 %s103, 1
    %s105 = scalar_select %p102, %s103, %s104
    %p108 = pneg %p102
    %p109 = scmp.eq.s32.totalorder %s9, 1
    %p110 = por %p108, %p109
    %p111 = scmp.ne.s32.totalorder %s103, %s106
    %p112 = scmp.eq.s32.totalorder %s9, 0
    %p113 = por %p111, %p112
    %p114 = scmp.ne.s32.totalorder %s103, %s106
    %p115 = scmp.eq.s32.totalorder %s14, 1
    %p116 = por %p114, %p115
    %p117 = scmp.ne.s32.totalorder %s106, %s107
    %p118 = scmp.eq.s32.totalorder %s14, 0
    %p119 = por %p117, %p118
    %p120 = scmp.ne.s32.totalorder %s106, %s107
    %p121 = scmp.eq.s32.totalorder %s15, 1
    %p122 = por %p120, %p121
    %p124 = scmp.ne.s32.totalorder %s107, %s123
    %p125 = scmp.eq.s32.totalorder %s15, 0
    %p126 = por %p124, %p125
    %p127 = scmp.le.s32.totalorder 1, %s9
    %p128 = scmp.lt.s32.totalorder %s9, 3
    %p129 = pnand %p127, %p128
    %p130 = pneg %p129
    // Predicated region
    $region9: #{out_forward.1} parent=5 // pred_check
      _
    $region10: #{out_forward.1} parent=5 // pred_check_branch
      %132 = sbr.rel (%p129) target = $region12
    $region11: #{out_forward.1} parent=5 // pred_region
      %s133 = ssub.s32 %s9, 1
      // Predicated region
      $region13: #{out_forward.1} parent=11 // pred_check
        %p134 = pneg %p70
      $region14: #{out_forward.1} parent=11 // pred_check_branch
        %136 = sbr.rel (%p134) target = $region16
      $region15: #{out_forward.1} parent=11 // pred_region
        _
      $region16: #{out_forward.1} parent=11 // pred_fallthru
        _
      // Predicated region
      $region17: #{out_forward.1} parent=11 // pred_check
        %p137 = pneg %p91
      $region18: #{out_forward.1} parent=11 // pred_check_branch
        %139 = sbr.rel (%p137) target = $region20
      $region19: #{out_forward.1} parent=11 // pred_region
        _
      $region20: #{out_forward.1} parent=11 // pred_fallthru
        _
    $region12: #{out_forward.1} parent=5 // pred_fallthru
      _
    %p140 = scmp.lt.s32.totalorder %s9, 2
    // Predicated region
    $region21: #{out_forward.1} parent=5 // pred_check
      %p141 = pneg %p140
    $region22: #{out_forward.1} parent=5 // pred_check_branch
      %143 = sbr.rel (%p141) target = $region24
    $region23: #{out_forward.1} parent=5 // pred_region
      // Predicated region
      $region25: #{out_forward.1} parent=23 // pred_check
        %p144 = pneg %p43
      $region26: #{out_forward.1} parent=23 // pred_check_branch
        %146 = sbr.rel (%p144) target = $region28
      $region27: #{out_forward.1} parent=23 // pred_region
        %s147 = smul.u32 32, %s17
        %p148 = scmp.lt.s32.totalorder %s16, 1
        %s149 = scalar_select %p148, %s16, 1
        %p150 = scmp.lt.s32.totalorder %s147, 31
        %s151 = scalar_select %p150, %s147, 31
        %s152 = smul.addr %s149, 32
        %s153 = sadd.s32 %s151, %s152
        %s154 = smul.addr %s153, 4
        %s155 = scalar_lea.vmem %s0, %s154
        %s156 = smul.u32 32, %s17
      $region28: #{out_forward.1} parent=23 // pred_fallthru
        _
    $region24: #{out_forward.1} parent=5 // pred_fallthru
      _
    %p157 = scmp.le.s32.totalorder 1, %s9
    %p158 = scmp.lt.s32.totalorder %s9, 3
    %p159 = pnand %p157, %p158
    %p160 = pneg %p159
    // Predicated region
    $region29: #{out_forward.1} parent=5 // pred_check
      _
    $region30: #{out_forward.1} parent=5 // pred_check_branch
      %162 = sbr.rel (%p159) target = $region32
    $region31: #{out_forward.1} parent=5 // pred_region
      %s163 = ssub.s32 %s9, 1
      %s164 = smul.u32 32, %s19
      %p165 = scmp.lt.s32.totalorder %s18, 1
      %s166 = scalar_select %p165, %s18, 1
      %p167 = scmp.lt.s32.totalorder %s164, 31
      %s168 = scalar_select %p167, %s164, 31
      %s169 = smul.addr %s166, 32
      %s170 = sadd.s32 %s168, %s169
      %s171 = smul.addr %s170, 4
      %s172 = scalar_lea.vmem %s0, %s171
      %p173 = pneg %p49
      %p174 = pneg %p46
      %p175 = pneg %p70
      %p176 = pneg %p67
      %p177 = pneg %p91
      %p178 = pneg %p88
      %p179 = pneg %p119
      %p180 = pneg %p116
      %s181 = smul.u32 32, %s19
      %p182 = scmp.lt.s32.totalorder %s18, 1
      %s183 = scalar_select %p182, %s18, 1
      %p184 = scmp.lt.s32.totalorder %s181, 31
      %s185 = scalar_select %p184, %s181, 31
      %s186 = smul.addr %s183, 32
      %s187 = sadd.s32 %s185, %s186
      %s188 = smul.addr %s187, 2
      %s189 = scalar_lea.vmem %s3, %s188
      %s190 = smul.u32 32, %s19
      %p191 = scmp.lt.s32.totalorder %s18, 1
      %s192 = scalar_select %p191, %s18, 1
      %p193 = scmp.lt.s32.totalorder %s190, 31
      %s194 = scalar_select %p193, %s190, 31
      %s195 = smul.addr %s192, 32
      %s196 = sadd.s32 %s194, %s195
      %s197 = smul.addr %s196, 4
      %s198 = scalar_lea.vmem %s0, %s197
      %s199 = smul.u32 32, %s19
      %s200 = smul.u32 32, %s19
      %p201 = scmp.lt.s32.totalorder %s18, 1
      %s202 = scalar_select %p201, %s18, 1
      %p203 = scmp.lt.s32.totalorder %s200, 31
      %s204 = scalar_select %p203, %s200, 31
      %s205 = smul.addr %s202, 32
      %s206 = sadd.s32 %s204, %s205
      %s207 = smul.addr %s206, 2
      %s208 = scalar_lea.vmem %s3, %s207
      %s209 = smul.u32 32, %s19
      %v210 = vld [vmem:[%s1] sm:$0x3]
      %v211 = vld [vmem:[%s198] sm:$0xff]
      %v212 = vld [vmem:[%s198 + $0x8] sm:$0xff]
      %v213 = vld [vmem:[%s198 + $0x10] sm:$0xff]
      %v214 = vld [vmem:[%s198 + $0x18] sm:$0xff]
      %v215 = vld [vmem:[%s198 + $0x20] sm:$0xff]
      %v216 = vld [vmem:[%s198 + $0x28] sm:$0xff]
      %v217 = vld [vmem:[%s198 + $0x30] sm:$0xff]
      %v218 = vld [vmem:[%s198 + $0x38] sm:$0xff]
      %v219 = vld [vmem:[%s198 + $0x40] sm:$0xff]
      %v220 = vld [vmem:[%s198 + $0x48] sm:$0xff]
      %v221 = vld [vmem:[%s198 + $0x50] sm:$0xff]
      %v222 = vld [vmem:[%s198 + $0x58] sm:$0xff]
      %v223 = vld [vmem:[%s198 + $0x60] sm:$0xff]
      %v224 = vld [vmem:[%s198 + $0x68] sm:$0xff]
      %v225 = vld [vmem:[%s198 + $0x70] sm:$0xff]
      %v226 = vld [vmem:[%s198 + $0x78] sm:$0xff]
      %v227 = vld [vmem:[%s2] sm:$0x3]
      %229 = vset.pattern.permute.xlu0 0
      %230 = vperm.xlu0 %229, %v227
      %v231 = vpop.permute.xlu0 %230
      %249 = vst [vmem:[#allocation1] ss:$2 sm:$0xff] %v211
      %s250 = scalar_lea.vmem [#allocation1], 16
      %251 = vst [vmem:[%s250] ss:$2 sm:$0xff] %v212
      %s252 = scalar_lea.vmem [#allocation1], 32
      %253 = vst [vmem:[%s252] ss:$2 sm:$0xff] %v213
      %s254 = scalar_lea.vmem [#allocation1], 48
      %255 = vst [vmem:[%s254] ss:$2 sm:$0xff] %v214
      %v256 = vld.sshfl [vmem:[#allocation1] sm:$0xff pattern:$0x75316420]
      %v257 = vld.sshfl [vmem:[#allocation1 + $0x8] sm:$0xff pattern:$0x75316420]
      %v258 = vld.sshfl [vmem:[#allocation1 + $0x10] sm:$0xff pattern:$0x75316420]
      %v259 = vld.sshfl [vmem:[#allocation1 + $0x18] sm:$0xff pattern:$0x75316420]
      %v260 = vld.sshfl [vmem:[#allocation1 + $0x20] sm:$0xff pattern:$0x75316420]
      %v261 = vld.sshfl [vmem:[#allocation1 + $0x28] sm:$0xff pattern:$0x75316420]
      %v262 = vld.sshfl [vmem:[#allocation1 + $0x30] sm:$0xff pattern:$0x75316420]
      %v263 = vld.sshfl [vmem:[#allocation1 + $0x38] sm:$0xff pattern:$0x75316420]
      %264 = vst [vmem:[#allocation1] ss:$2 sm:$0xff] %v215
      %265 = vst [vmem:[%s250] ss:$2 sm:$0xff] %v216
      %266 = vst [vmem:[%s252] ss:$2 sm:$0xff] %v217
      %267 = vst [vmem:[%s254] ss:$2 sm:$0xff] %v218
      %v268 = vld.sshfl [vmem:[#allocation1] sm:$0xff pattern:$0x75316420]
      %v269 = vld.sshfl [vmem:[#allocation1 + $0x8] sm:$0xff pattern:$0x75316420]
      %v270 = vld.sshfl [vmem:[#allocation1 + $0x10] sm:$0xff pattern:$0x75316420]
      %v271 = vld.sshfl [vmem:[#allocation1 + $0x18] sm:$0xff pattern:$0x75316420]
      %v272 = vld.sshfl [vmem:[#allocation1 + $0x20] sm:$0xff pattern:$0x75316420]
      %v273 = vld.sshfl [vmem:[#allocation1 + $0x28] sm:$0xff pattern:$0x75316420]
      %v274 = vld.sshfl [vmem:[#allocation1 + $0x30] sm:$0xff pattern:$0x75316420]
      %v275 = vld.sshfl [vmem:[#allocation1 + $0x38] sm:$0xff pattern:$0x75316420]
      %276 = vst [vmem:[#allocation1] ss:$2 sm:$0xff] %v219
      %277 = vst [vmem:[%s250] ss:$2 sm:$0xff] %v220
      %278 = vst [vmem:[%s252] ss:$2 sm:$0xff] %v221
      %279 = vst [vmem:[%s254] ss:$2 sm:$0xff] %v222
      %v280 = vld.sshfl [vmem:[#allocation1] sm:$0xff pattern:$0x75316420]
      %v281 = vld.sshfl [vmem:[#allocation1 + $0x8] sm:$0xff pattern:$0x75316420]
      %v282 = vld.sshfl [vmem:[#allocation1 + $0x10] sm:$0xff pattern:$0x75316420]
      %v283 = vld.sshfl [vmem:[#allocation1 + $0x18] sm:$0xff pattern:$0x75316420]
      %v284 = vld.sshfl [vmem:[#allocation1 + $0x20] sm:$0xff pattern:$0x75316420]
      %v285 = vld.sshfl [vmem:[#allocation1 + $0x28] sm:$0xff pattern:$0x75316420]
      %v286 = vld.sshfl [vmem:[#allocation1 + $0x30] sm:$0xff pattern:$0x75316420]
      %v287 = vld.sshfl [vmem:[#allocation1 + $0x38] sm:$0xff pattern:$0x75316420]
      %288 = vst [vmem:[#allocation1] ss:$2 sm:$0xff] %v223
      %289 = vst [vmem:[%s250] ss:$2 sm:$0xff] %v224
      %290 = vst [vmem:[%s252] ss:$2 sm:$0xff] %v225
      %291 = vst [vmem:[%s254] ss:$2 sm:$0xff] %v226
      %v292 = vld.sshfl [vmem:[#allocation1] sm:$0xff pattern:$0x75316420]
      %v293 = vld.sshfl [vmem:[#allocation1 + $0x8] sm:$0xff pattern:$0x75316420]
      %v294 = vld.sshfl [vmem:[#allocation1 + $0x10] sm:$0xff pattern:$0x75316420]
      %v295 = vld.sshfl [vmem:[#allocation1 + $0x18] sm:$0xff pattern:$0x75316420]
      %v296 = vld.sshfl [vmem:[#allocation1 + $0x20] sm:$0xff pattern:$0x75316420]
      %v297 = vld.sshfl [vmem:[#allocation1 + $0x28] sm:$0xff pattern:$0x75316420]
      %v298 = vld.sshfl [vmem:[#allocation1 + $0x30] sm:$0xff pattern:$0x75316420]
      %v299 = vld.sshfl [vmem:[#allocation1 + $0x38] sm:$0xff pattern:$0x75316420]
      %vm300 = vcmask 31744
      %v302 = vsel %vm300, %v210, 0
      %vm304 = vcmask 1043456
      %v305 = vsel %vm304, %v256, 0
      %v307 = vsel %vm304, %v257, 0
      %v309 = vsel %vm304, %v258, 0
      %v311 = vsel %vm304, %v259, 0
      %v313 = vsel %vm304, %v260, 0
      %v315 = vsel %vm304, %v261, 0
      %v317 = vsel %vm304, %v262, 0
      %v319 = vsel %vm304, %v263, 0
      %v321 = vsel %vm304, %v268, 0
      %v323 = vsel %vm304, %v269, 0
      %v325 = vsel %vm304, %v270, 0
      %v327 = vsel %vm304, %v271, 0
      %v329 = vsel %vm304, %v272, 0
      %v331 = vsel %vm304, %v273, 0
      %v333 = vsel %vm304, %v274, 0
      %v335 = vsel %vm304, %v275, 0
      %v337 = vsel %vm304, %v280, 0
      %v339 = vsel %vm304, %v281, 0
      %v341 = vsel %vm304, %v282, 0
      %v343 = vsel %vm304, %v283, 0
      %v345 = vsel %vm304, %v284, 0
      %v347 = vsel %vm304, %v285, 0
      %v349 = vsel %vm304, %v286, 0
      %v351 = vsel %vm304, %v287, 0
      %v353 = vsel %vm304, %v292, 0
      %v355 = vsel %vm304, %v293, 0
      %v357 = vsel %vm304, %v294, 0
      %v359 = vsel %vm304, %v295, 0
      %v361 = vsel %vm304, %v296, 0
      %v363 = vsel %vm304, %v297, 0
      %v365 = vsel %vm304, %v298, 0
      %v367 = vsel %vm304, %v299, 0
      %369 = vmatpush.msra.mxu0 0.0
      %370 = vmatpush.msra.mxu0 0.0
      %371 = vmatpush.msra.mxu0 0.0
      %372 = vmatpush.msra.mxu0 0.0
      %373 = vmatpush.msra.mxu0 0.0
      %374 = vmatpush.msra.mxu0 0.0
      %375 = vmatpush.msra.mxu0 0.0
      %376 = vmatpush.msra.mxu0 0.0
      %377 = vmatpush.msra.mxu0 0.0
      %378 = vmatpush.msra.mxu0 0.0
      %379 = vmatpush.msra.mxu0 0.0
      %380 = vmatpush.msra.mxu0 0.0
      %381 = vmatpush.msra.mxu0 0.0
      %382 = vmatpush.msra.mxu0 0.0
      %383 = vmatpush.msra.mxu0 0.0
      %384 = vmatpush.msra.mxu0 %v305
      %385 = vmatmul.f32.gmra.mxu0 %v302
      %v386 = vpop.f32.mrf.mxu0
      %v387 = vadd.f32 %v231, %v386
      %388 = vdwg.mxu0
      %389 = vmatpush.msra.mxu0 0.0
      %390 = vmatpush.msra.mxu0 0.0
      %391 = vmatpush.msra.mxu0 0.0
      %392 = vmatpush.msra.mxu0 0.0
      %393 = vmatpush.msra.mxu0 0.0
      %394 = vmatpush.msra.mxu0 0.0
      %395 = vmatpush.msra.mxu0 0.0
      %396 = vmatpush.msra.mxu0 0.0
      %397 = vmatpush.msra.mxu0 0.0
      %398 = vmatpush.msra.mxu0 0.0
      %399 = vmatpush.msra.mxu0 0.0
      %400 = vmatpush.msra.mxu0 0.0
      %401 = vmatpush.msra.mxu0 0.0
      %402 = vmatpush.msra.mxu0 0.0
      %403 = vmatpush.msra.mxu0 0.0
      %404 = vmatpush.msra.mxu0 %v307
      %405 = vmatmul.f32.gmra.mxu0 %v302
      %v406 = vpop.f32.mrf.mxu0
      %v407 = vadd.f32 %v231, %v406
      %408 = vdwg.mxu0
      %409 = vmatpush.msra.mxu0 0.0
      %410 = vmatpush.msra.mxu0 0.0
      %411 = vmatpush.msra.mxu0 0.0
      %412 = vmatpush.msra.mxu0 0.0
      %413 = vmatpush.msra.mxu0 0.0
      %414 = vmatpush.msra.mxu0 0.0
      %415 = vmatpush.msra.mxu0 0.0
      %416 = vmatpush.msra.mxu0 0.0
      %417 = vmatpush.msra.mxu0 0.0
      %418 = vmatpush.msra.mxu0 0.0
      %419 = vmatpush.msra.mxu0 0.0
      %420 = vmatpush.msra.mxu0 0.0
      %421 = vmatpush.msra.mxu0 0.0
      %422 = vmatpush.msra.mxu0 0.0
      %423 = vmatpush.msra.mxu0 0.0
      %424 = vmatpush.msra.mxu0 %v309
      %425 = vmatmul.f32.gmra.mxu0 %v302
      %v426 = vpop.f32.mrf.mxu0
      %v427 = vadd.f32 %v231, %v426
      %428 = vdwg.mxu0
      %429 = vmatpush.msra.mxu0 0.0
      %430 = vmatpush.msra.mxu0 0.0
      %431 = vmatpush.msra.mxu0 0.0
      %432 = vmatpush.msra.mxu0 0.0
      %433 = vmatpush.msra.mxu0 0.0
      %434 = vmatpush.msra.mxu0 0.0
      %435 = vmatpush.msra.mxu0 0.0
      %436 = vmatpush.msra.mxu0 0.0
      %437 = vmatpush.msra.mxu0 0.0
      %438 = vmatpush.msra.mxu0 0.0
      %439 = vmatpush.msra.mxu0 0.0
      %440 = vmatpush.msra.mxu0 0.0
      %441 = vmatpush.msra.mxu0 0.0
      %442 = vmatpush.msra.mxu0 0.0
      %443 = vmatpush.msra.mxu0 0.0
      %444 = vmatpush.msra.mxu0 %v311
      %445 = vmatmul.f32.gmra.mxu0 %v302
      %v446 = vpop.f32.mrf.mxu0
      %v447 = vadd.f32 %v231, %v446
      %448 = vdwg.mxu0
      %449 = vmatpush.msra.mxu0 0.0
      %450 = vmatpush.msra.mxu0 0.0
      %451 = vmatpush.msra.mxu0 0.0
      %452 = vmatpush.msra.mxu0 0.0
      %453 = vmatpush.msra.mxu0 0.0
      %454 = vmatpush.msra.mxu0 0.0
      %455 = vmatpush.msra.mxu0 0.0
      %456 = vmatpush.msra.mxu0 0.0
      %457 = vmatpush.msra.mxu0 0.0
      %458 = vmatpush.msra.mxu0 0.0
      %459 = vmatpush.msra.mxu0 0.0
      %460 = vmatpush.msra.mxu0 0.0
      %461 = vmatpush.msra.mxu0 0.0
      %462 = vmatpush.msra.mxu0 0.0
      %463 = vmatpush.msra.mxu0 0.0
      %464 = vmatpush.msra.mxu0 %v313
      %465 = vmatmul.f32.gmra.mxu0 %v302
      %v466 = vpop.f32.mrf.mxu0
      %v467 = vadd.f32 %v231, %v466
      %468 = vdwg.mxu0
      %469 = vmatpush.msra.mxu0 0.0
      %470 = vmatpush.msra.mxu0 0.0
      %471 = vmatpush.msra.mxu0 0.0
      %472 = vmatpush.msra.mxu0 0.0
      %473 = vmatpush.msra.mxu0 0.0
      %474 = vmatpush.msra.mxu0 0.0
      %475 = vmatpush.msra.mxu0 0.0
      %476 = vmatpush.msra.mxu0 0.0
      %477 = vmatpush.msra.mxu0 0.0
      %478 = vmatpush.msra.mxu0 0.0
      %479 = vmatpush.msra.mxu0 0.0
      %480 = vmatpush.msra.mxu0 0.0
      %481 = vmatpush.msra.mxu0 0.0
      %482 = vmatpush.msra.mxu0 0.0
      %483 = vmatpush.msra.mxu0 0.0
      %484 = vmatpush.msra.mxu0 %v315
      %485 = vmatmul.f32.gmra.mxu0 %v302
      %v486 = vpop.f32.mrf.mxu0
      %v487 = vadd.f32 %v231, %v486
      %488 = vdwg.mxu0
      %489 = vmatpush.msra.mxu0 0.0
      %490 = vmatpush.msra.mxu0 0.0
      %491 = vmatpush.msra.mxu0 0.0
      %492 = vmatpush.msra.mxu0 0.0
      %493 = vmatpush.msra.mxu0 0.0
      %494 = vmatpush.msra.mxu0 0.0
      %495 = vmatpush.msra.mxu0 0.0
      %496 = vmatpush.msra.mxu0 0.0
      %497 = vmatpush.msra.mxu0 0.0
      %498 = vmatpush.msra.mxu0 0.0
      %499 = vmatpush.msra.mxu0 0.0
      %500 = vmatpush.msra.mxu0 0.0
      %501 = vmatpush.msra.mxu0 0.0
      %502 = vmatpush.msra.mxu0 0.0
      %503 = vmatpush.msra.mxu0 0.0
      %504 = vmatpush.msra.mxu0 %v317
      %505 = vmatmul.f32.gmra.mxu0 %v302
      %v506 = vpop.f32.mrf.mxu0
      %v507 = vadd.f32 %v231, %v506
      %508 = vdwg.mxu0
      %509 = vmatpush.msra.mxu0 0.0
      %510 = vmatpush.msra.mxu0 0.0
      %511 = vmatpush.msra.mxu0 0.0
      %512 = vmatpush.msra.mxu0 0.0
      %513 = vmatpush.msra.mxu0 0.0
      %514 = vmatpush.msra.mxu0 0.0
      %515 = vmatpush.msra.mxu0 0.0
      %516 = vmatpush.msra.mxu0 0.0
      %517 = vmatpush.msra.mxu0 0.0
      %518 = vmatpush.msra.mxu0 0.0
      %519 = vmatpush.msra.mxu0 0.0
      %520 = vmatpush.msra.mxu0 0.0
      %521 = vmatpush.msra.mxu0 0.0
      %522 = vmatpush.msra.mxu0 0.0
      %523 = vmatpush.msra.mxu0 0.0
      %524 = vmatpush.msra.mxu0 %v319
      %525 = vmatmul.f32.gmra.mxu0 %v302
      %v526 = vpop.f32.mrf.mxu0
      %v527 = vadd.f32 %v231, %v526
      %528 = vdwg.mxu0
      %529 = vmatpush.msra.mxu0 0.0
      %530 = vmatpush.msra.mxu0 0.0
      %531 = vmatpush.msra.mxu0 0.0
      %532 = vmatpush.msra.mxu0 0.0
      %533 = vmatpush.msra.mxu0 0.0
      %534 = vmatpush.msra.mxu0 0.0
      %535 = vmatpush.msra.mxu0 0.0
      %536 = vmatpush.msra.mxu0 0.0
      %537 = vmatpush.msra.mxu0 0.0
      %538 = vmatpush.msra.mxu0 0.0
      %539 = vmatpush.msra.mxu0 0.0
      %540 = vmatpush.msra.mxu0 0.0
      %541 = vmatpush.msra.mxu0 0.0
      %542 = vmatpush.msra.mxu0 0.0
      %543 = vmatpush.msra.mxu0 0.0
      %544 = vmatpush.msra.mxu0 %v321
      %545 = vmatmul.f32.gmra.mxu0 %v302
      %v546 = vpop.f32.mrf.mxu0
      %v547 = vadd.f32 %v231, %v546
      %548 = vdwg.mxu0
      %549 = vmatpush.msra.mxu0 0.0
      %550 = vmatpush.msra.mxu0 0.0
      %551 = vmatpush.msra.mxu0 0.0
      %552 = vmatpush.msra.mxu0 0.0
      %553 = vmatpush.msra.mxu0 0.0
      %554 = vmatpush.msra.mxu0 0.0
      %555 = vmatpush.msra.mxu0 0.0
      %556 = vmatpush.msra.mxu0 0.0
      %557 = vmatpush.msra.mxu0 0.0
      %558 = vmatpush.msra.mxu0 0.0
      %559 = vmatpush.msra.mxu0 0.0
      %560 = vmatpush.msra.mxu0 0.0
      %561 = vmatpush.msra.mxu0 0.0
      %562 = vmatpush.msra.mxu0 0.0
      %563 = vmatpush.msra.mxu0 0.0
      %564 = vmatpush.msra.mxu0 %v323
      %565 = vmatmul.f32.gmra.mxu0 %v302
      %v566 = vpop.f32.mrf.mxu0
      %v567 = vadd.f32 %v231, %v566
      %568 = vdwg.mxu0
      %569 = vmatpush.msra.mxu0 0.0
      %570 = vmatpush.msra.mxu0 0.0
      %571 = vmatpush.msra.mxu0 0.0
      %572 = vmatpush.msra.mxu0 0.0
      %573 = vmatpush.msra.mxu0 0.0
      %574 = vmatpush.msra.mxu0 0.0
      %575 = vmatpush.msra.mxu0 0.0
      %576 = vmatpush.msra.mxu0 0.0
      %577 = vmatpush.msra.mxu0 0.0
      %578 = vmatpush.msra.mxu0 0.0
      %579 = vmatpush.msra.mxu0 0.0
      %580 = vmatpush.msra.mxu0 0.0
      %581 = vmatpush.msra.mxu0 0.0
      %582 = vmatpush.msra.mxu0 0.0
      %583 = vmatpush.msra.mxu0 0.0
      %584 = vmatpush.msra.mxu0 %v325
      %585 = vmatmul.f32.gmra.mxu0 %v302
      %v586 = vpop.f32.mrf.mxu0
      %v587 = vadd.f32 %v231, %v586
      %588 = vdwg.mxu0
      %589 = vmatpush.msra.mxu0 0.0
      %590 = vmatpush.msra.mxu0 0.0
      %591 = vmatpush.msra.mxu0 0.0
      %592 = vmatpush.msra.mxu0 0.0
      %593 = vmatpush.msra.mxu0 0.0
      %594 = vmatpush.msra.mxu0 0.0
      %595 = vmatpush.msra.mxu0 0.0
      %596 = vmatpush.msra.mxu0 0.0
      %597 = vmatpush.msra.mxu0 0.0
      %598 = vmatpush.msra.mxu0 0.0
      %599 = vmatpush.msra.mxu0 0.0
      %600 = vmatpush.msra.mxu0 0.0
      %601 = vmatpush.msra.mxu0 0.0
      %602 = vmatpush.msra.mxu0 0.0
      %603 = vmatpush.msra.mxu0 0.0
      %604 = vmatpush.msra.mxu0 %v327
      %605 = vmatmul.f32.gmra.mxu0 %v302
      %v606 = vpop.f32.mrf.mxu0
      %v607 = vadd.f32 %v231, %v606
      %608 = vdwg.mxu0
      %609 = vmatpush.msra.mxu0 0.0
      %610 = vmatpush.msra.mxu0 0.0
      %611 = vmatpush.msra.mxu0 0.0
      %612 = vmatpush.msra.mxu0 0.0
      %613 = vmatpush.msra.mxu0 0.0
      %614 = vmatpush.msra.mxu0 0.0
      %615 = vmatpush.msra.mxu0 0.0
      %616 = vmatpush.msra.mxu0 0.0
      %617 = vmatpush.msra.mxu0 0.0
      %618 = vmatpush.msra.mxu0 0.0
      %619 = vmatpush.msra.mxu0 0.0
      %620 = vmatpush.msra.mxu0 0.0
      %621 = vmatpush.msra.mxu0 0.0
      %622 = vmatpush.msra.mxu0 0.0
      %623 = vmatpush.msra.mxu0 0.0
      %624 = vmatpush.msra.mxu0 %v329
      %625 = vmatmul.f32.gmra.mxu0 %v302
      %v626 = vpop.f32.mrf.mxu0
      %v627 = vadd.f32 %v231, %v626
      %628 = vdwg.mxu0
      %629 = vmatpush.msra.mxu0 0.0
      %630 = vmatpush.msra.mxu0 0.0
      %631 = vmatpush.msra.mxu0 0.0
      %632 = vmatpush.msra.mxu0 0.0
      %633 = vmatpush.msra.mxu0 0.0
      %634 = vmatpush.msra.mxu0 0.0
      %635 = vmatpush.msra.mxu0 0.0
      %636 = vmatpush.msra.mxu0 0.0
      %637 = vmatpush.msra.mxu0 0.0
      %638 = vmatpush.msra.mxu0 0.0
      %639 = vmatpush.msra.mxu0 0.0
      %640 = vmatpush.msra.mxu0 0.0
      %641 = vmatpush.msra.mxu0 0.0
      %642 = vmatpush.msra.mxu0 0.0
      %643 = vmatpush.msra.mxu0 0.0
      %644 = vmatpush.msra.mxu0 %v331
      %645 = vmatmul.f32.gmra.mxu0 %v302
      %v646 = vpop.f32.mrf.mxu0
      %v647 = vadd.f32 %v231, %v646
      %648 = vdwg.mxu0
      %649 = vmatpush.msra.mxu0 0.0
      %650 = vmatpush.msra.mxu0 0.0
      %651 = vmatpush.msra.mxu0 0.0
      %652 = vmatpush.msra.mxu0 0.0
      %653 = vmatpush.msra.mxu0 0.0
      %654 = vmatpush.msra.mxu0 0.0
      %655 = vmatpush.msra.mxu0 0.0
      %656 = vmatpush.msra.mxu0 0.0
      %657 = vmatpush.msra.mxu0 0.0
      %658 = vmatpush.msra.mxu0 0.0
      %659 = vmatpush.msra.mxu0 0.0
      %660 = vmatpush.msra.mxu0 0.0
      %661 = vmatpush.msra.mxu0 0.0
      %662 = vmatpush.msra.mxu0 0.0
      %663 = vmatpush.msra.mxu0 0.0
      %664 = vmatpush.msra.mxu0 %v333
      %665 = vmatmul.f32.gmra.mxu0 %v302
      %v666 = vpop.f32.mrf.mxu0
      %v667 = vadd.f32 %v231, %v666
      %668 = vdwg.mxu0
      %669 = vmatpush.msra.mxu0 0.0
      %670 = vmatpush.msra.mxu0 0.0
      %671 = vmatpush.msra.mxu0 0.0
      %672 = vmatpush.msra.mxu0 0.0
      %673 = vmatpush.msra.mxu0 0.0
      %674 = vmatpush.msra.mxu0 0.0
      %675 = vmatpush.msra.mxu0 0.0
      %676 = vmatpush.msra.mxu0 0.0
      %677 = vmatpush.msra.mxu0 0.0
      %678 = vmatpush.msra.mxu0 0.0
      %679 = vmatpush.msra.mxu0 0.0
      %680 = vmatpush.msra.mxu0 0.0
      %681 = vmatpush.msra.mxu0 0.0
      %682 = vmatpush.msra.mxu0 0.0
      %683 = vmatpush.msra.mxu0 0.0
      %684 = vmatpush.msra.mxu0 %v335
      %685 = vmatmul.f32.gmra.mxu0 %v302
      %v686 = vpop.f32.mrf.mxu0
      %v687 = vadd.f32 %v231, %v686
      %688 = vdwg.mxu0
      %689 = vmatpush.msra.mxu0 0.0
      %690 = vmatpush.msra.mxu0 0.0
      %691 = vmatpush.msra.mxu0 0.0
      %692 = vmatpush.msra.mxu0 0.0
      %693 = vmatpush.msra.mxu0 0.0
      %694 = vmatpush.msra.mxu0 0.0
      %695 = vmatpush.msra.mxu0 0.0
      %696 = vmatpush.msra.mxu0 0.0
      %697 = vmatpush.msra.mxu0 0.0
      %698 = vmatpush.msra.mxu0 0.0
      %699 = vmatpush.msra.mxu0 0.0
      %700 = vmatpush.msra.mxu0 0.0
      %701 = vmatpush.msra.mxu0 0.0
      %702 = vmatpush.msra.mxu0 0.0
      %703 = vmatpush.msra.mxu0 0.0
      %704 = vmatpush.msra.mxu0 %v337
      %705 = vmatmul.f32.gmra.mxu0 %v302
      %v706 = vpop.f32.mrf.mxu0
      %v707 = vadd.f32 %v231, %v706
      %708 = vdwg.mxu0
      %709 = vmatpush.msra.mxu0 0.0
      %710 = vmatpush.msra.mxu0 0.0
      %711 = vmatpush.msra.mxu0 0.0
      %712 = vmatpush.msra.mxu0 0.0
      %713 = vmatpush.msra.mxu0 0.0
      %714 = vmatpush.msra.mxu0 0.0
      %715 = vmatpush.msra.mxu0 0.0
      %716 = vmatpush.msra.mxu0 0.0
      %717 = vmatpush.msra.mxu0 0.0
      %718 = vmatpush.msra.mxu0 0.0
      %719 = vmatpush.msra.mxu0 0.0
      %720 = vmatpush.msra.mxu0 0.0
      %721 = vmatpush.msra.mxu0 0.0
      %722 = vmatpush.msra.mxu0 0.0
      %723 = vmatpush.msra.mxu0 0.0
      %724 = vmatpush.msra.mxu0 %v339
      %725 = vmatmul.f32.gmra.mxu0 %v302
      %v726 = vpop.f32.mrf.mxu0
      %v727 = vadd.f32 %v231, %v726
      %728 = vdwg.mxu0
      %729 = vmatpush.msra.mxu0 0.0
      %730 = vmatpush.msra.mxu0 0.0
      %731 = vmatpush.msra.mxu0 0.0
      %732 = vmatpush.msra.mxu0 0.0
      %733 = vmatpush.msra.mxu0 0.0
      %734 = vmatpush.msra.mxu0 0.0
      %735 = vmatpush.msra.mxu0 0.0
      %736 = vmatpush.msra.mxu0 0.0
      %737 = vmatpush.msra.mxu0 0.0
      %738 = vmatpush.msra.mxu0 0.0
      %739 = vmatpush.msra.mxu0 0.0
      %740 = vmatpush.msra.mxu0 0.0
      %741 = vmatpush.msra.mxu0 0.0
      %742 = vmatpush.msra.mxu0 0.0
      %743 = vmatpush.msra.mxu0 0.0
      %744 = vmatpush.msra.mxu0 %v341
      %745 = vmatmul.f32.gmra.mxu0 %v302
      %v746 = vpop.f32.mrf.mxu0
      %v747 = vadd.f32 %v231, %v746
      %748 = vdwg.mxu0
      %749 = vmatpush.msra.mxu0 0.0
      %750 = vmatpush.msra.mxu0 0.0
      %751 = vmatpush.msra.mxu0 0.0
      %752 = vmatpush.msra.mxu0 0.0
      %753 = vmatpush.msra.mxu0 0.0
      %754 = vmatpush.msra.mxu0 0.0
      %755 = vmatpush.msra.mxu0 0.0
      %756 = vmatpush.msra.mxu0 0.0
      %757 = vmatpush.msra.mxu0 0.0
      %758 = vmatpush.msra.mxu0 0.0
      %759 = vmatpush.msra.mxu0 0.0
      %760 = vmatpush.msra.mxu0 0.0
      %761 = vmatpush.msra.mxu0 0.0
      %762 = vmatpush.msra.mxu0 0.0
      %763 = vmatpush.msra.mxu0 0.0
      %764 = vmatpush.msra.mxu0 %v343
      %765 = vmatmul.f32.gmra.mxu0 %v302
      %v766 = vpop.f32.mrf.mxu0
      %v767 = vadd.f32 %v231, %v766
      %768 = vdwg.mxu0
      %769 = vmatpush.msra.mxu0 0.0
      %770 = vmatpush.msra.mxu0 0.0
      %771 = vmatpush.msra.mxu0 0.0
      %772 = vmatpush.msra.mxu0 0.0
      %773 = vmatpush.msra.mxu0 0.0
      %774 = vmatpush.msra.mxu0 0.0
      %775 = vmatpush.msra.mxu0 0.0
      %776 = vmatpush.msra.mxu0 0.0
      %777 = vmatpush.msra.mxu0 0.0
      %778 = vmatpush.msra.mxu0 0.0
      %779 = vmatpush.msra.mxu0 0.0
      %780 = vmatpush.msra.mxu0 0.0
      %781 = vmatpush.msra.mxu0 0.0
      %782 = vmatpush.msra.mxu0 0.0
      %783 = vmatpush.msra.mxu0 0.0
      %784 = vmatpush.msra.mxu0 %v345
      %785 = vmatmul.f32.gmra.mxu0 %v302
      %v786 = vpop.f32.mrf.mxu0
      %v787 = vadd.f32 %v231, %v786
      %788 = vdwg.mxu0
      %789 = vmatpush.msra.mxu0 0.0
      %790 = vmatpush.msra.mxu0 0.0
      %791 = vmatpush.msra.mxu0 0.0
      %792 = vmatpush.msra.mxu0 0.0
      %793 = vmatpush.msra.mxu0 0.0
      %794 = vmatpush.msra.mxu0 0.0
      %795 = vmatpush.msra.mxu0 0.0
      %796 = vmatpush.msra.mxu0 0.0
      %797 = vmatpush.msra.mxu0 0.0
      %798 = vmatpush.msra.mxu0 0.0
      %799 = vmatpush.msra.mxu0 0.0
      %800 = vmatpush.msra.mxu0 0.0
      %801 = vmatpush.msra.mxu0 0.0
      %802 = vmatpush.msra.mxu0 0.0
      %803 = vmatpush.msra.mxu0 0.0
      %804 = vmatpush.msra.mxu0 %v347
      %805 = vmatmul.f32.gmra.mxu0 %v302
      %v806 = vpop.f32.mrf.mxu0
      %v807 = vadd.f32 %v231, %v806
      %808 = vdwg.mxu0
      %809 = vmatpush.msra.mxu0 0.0
      %810 = vmatpush.msra.mxu0 0.0
      %811 = vmatpush.msra.mxu0 0.0
      %812 = vmatpush.msra.mxu0 0.0
      %813 = vmatpush.msra.mxu0 0.0
      %814 = vmatpush.msra.mxu0 0.0
      %815 = vmatpush.msra.mxu0 0.0
      %816 = vmatpush.msra.mxu0 0.0
      %817 = vmatpush.msra.mxu0 0.0
      %818 = vmatpush.msra.mxu0 0.0
      %819 = vmatpush.msra.mxu0 0.0
      %820 = vmatpush.msra.mxu0 0.0
      %821 = vmatpush.msra.mxu0 0.0
      %822 = vmatpush.msra.mxu0 0.0
      %823 = vmatpush.msra.mxu0 0.0
      %824 = vmatpush.msra.mxu0 %v349
      %825 = vmatmul.f32.gmra.mxu0 %v302
      %v826 = vpop.f32.mrf.mxu0
      %v827 = vadd.f32 %v231, %v826
      %828 = vdwg.mxu0
      %829 = vmatpush.msra.mxu0 0.0
      %830 = vmatpush.msra.mxu0 0.0
      %831 = vmatpush.msra.mxu0 0.0
      %832 = vmatpush.msra.mxu0 0.0
      %833 = vmatpush.msra.mxu0 0.0
      %834 = vmatpush.msra.mxu0 0.0
      %835 = vmatpush.msra.mxu0 0.0
      %836 = vmatpush.msra.mxu0 0.0
      %837 = vmatpush.msra.mxu0 0.0
      %838 = vmatpush.msra.mxu0 0.0
      %839 = vmatpush.msra.mxu0 0.0
      %840 = vmatpush.msra.mxu0 0.0
      %841 = vmatpush.msra.mxu0 0.0
      %842 = vmatpush.msra.mxu0 0.0
      %843 = vmatpush.msra.mxu0 0.0
      %844 = vmatpush.msra.mxu0 %v351
      %845 = vmatmul.f32.gmra.mxu0 %v302
      %v846 = vpop.f32.mrf.mxu0
      %v847 = vadd.f32 %v231, %v846
      %848 = vdwg.mxu0
      %849 = vmatpush.msra.mxu0 0.0
      %850 = vmatpush.msra.mxu0 0.0
      %851 = vmatpush.msra.mxu0 0.0
      %852 = vmatpush.msra.mxu0 0.0
      %853 = vmatpush.msra.mxu0 0.0
      %854 = vmatpush.msra.mxu0 0.0
      %855 = vmatpush.msra.mxu0 0.0
      %856 = vmatpush.msra.mxu0 0.0
      %857 = vmatpush.msra.mxu0 0.0
      %858 = vmatpush.msra.mxu0 0.0
      %859 = vmatpush.msra.mxu0 0.0
      %860 = vmatpush.msra.mxu0 0.0
      %861 = vmatpush.msra.mxu0 0.0
      %862 = vmatpush.msra.mxu0 0.0
      %863 = vmatpush.msra.mxu0 0.0
      %864 = vmatpush.msra.mxu0 %v353
      %865 = vmatmul.f32.gmra.mxu0 %v302
      %v866 = vpop.f32.mrf.mxu0
      %v867 = vadd.f32 %v231, %v866
      %868 = vdwg.mxu0
      %869 = vmatpush.msra.mxu0 0.0
      %870 = vmatpush.msra.mxu0 0.0
      %871 = vmatpush.msra.mxu0 0.0
      %872 = vmatpush.msra.mxu0 0.0
      %873 = vmatpush.msra.mxu0 0.0
      %874 = vmatpush.msra.mxu0 0.0
      %875 = vmatpush.msra.mxu0 0.0
      %876 = vmatpush.msra.mxu0 0.0
      %877 = vmatpush.msra.mxu0 0.0
      %878 = vmatpush.msra.mxu0 0.0
      %879 = vmatpush.msra.mxu0 0.0
      %880 = vmatpush.msra.mxu0 0.0
      %881 = vmatpush.msra.mxu0 0.0
      %882 = vmatpush.msra.mxu0 0.0
      %883 = vmatpush.msra.mxu0 0.0
      %884 = vmatpush.msra.mxu0 %v355
      %885 = vmatmul.f32.gmra.mxu0 %v302
      %v886 = vpop.f32.mrf.mxu0
      %v887 = vadd.f32 %v231, %v886
      %888 = vdwg.mxu0
      %889 = vmatpush.msra.mxu0 0.0
      %890 = vmatpush.msra.mxu0 0.0
      %891 = vmatpush.msra.mxu0 0.0
      %892 = vmatpush.msra.mxu0 0.0
      %893 = vmatpush.msra.mxu0 0.0
      %894 = vmatpush.msra.mxu0 0.0
      %895 = vmatpush.msra.mxu0 0.0
      %896 = vmatpush.msra.mxu0 0.0
      %897 = vmatpush.msra.mxu0 0.0
      %898 = vmatpush.msra.mxu0 0.0
      %899 = vmatpush.msra.mxu0 0.0
      %900 = vmatpush.msra.mxu0 0.0
      %901 = vmatpush.msra.mxu0 0.0
      %902 = vmatpush.msra.mxu0 0.0
      %903 = vmatpush.msra.mxu0 0.0
      %904 = vmatpush.msra.mxu0 %v357
      %905 = vmatmul.f32.gmra.mxu0 %v302
      %v906 = vpop.f32.mrf.mxu0
      %v907 = vadd.f32 %v231, %v906
      %908 = vdwg.mxu0
      %909 = vmatpush.msra.mxu0 0.0
      %910 = vmatpush.msra.mxu0 0.0
      %911 = vmatpush.msra.mxu0 0.0
      %912 = vmatpush.msra.mxu0 0.0
      %913 = vmatpush.msra.mxu0 0.0
      %914 = vmatpush.msra.mxu0 0.0
      %915 = vmatpush.msra.mxu0 0.0
      %916 = vmatpush.msra.mxu0 0.0
      %917 = vmatpush.msra.mxu0 0.0
      %918 = vmatpush.msra.mxu0 0.0
      %919 = vmatpush.msra.mxu0 0.0
      %920 = vmatpush.msra.mxu0 0.0
      %921 = vmatpush.msra.mxu0 0.0
      %922 = vmatpush.msra.mxu0 0.0
      %923 = vmatpush.msra.mxu0 0.0
      %924 = vmatpush.msra.mxu0 %v359
      %925 = vmatmul.f32.gmra.mxu0 %v302
      %v926 = vpop.f32.mrf.mxu0
      %v927 = vadd.f32 %v231, %v926
      %928 = vdwg.mxu0
      %929 = vmatpush.msra.mxu0 0.0
      %930 = vmatpush.msra.mxu0 0.0
      %931 = vmatpush.msra.mxu0 0.0
      %932 = vmatpush.msra.mxu0 0.0
      %933 = vmatpush.msra.mxu0 0.0
      %934 = vmatpush.msra.mxu0 0.0
      %935 = vmatpush.msra.mxu0 0.0
      %936 = vmatpush.msra.mxu0 0.0
      %937 = vmatpush.msra.mxu0 0.0
      %938 = vmatpush.msra.mxu0 0.0
      %939 = vmatpush.msra.mxu0 0.0
      %940 = vmatpush.msra.mxu0 0.0
      %941 = vmatpush.msra.mxu0 0.0
      %942 = vmatpush.msra.mxu0 0.0
      %943 = vmatpush.msra.mxu0 0.0
      %944 = vmatpush.msra.mxu0 %v361
      %945 = vmatmul.f32.gmra.mxu0 %v302
      %v946 = vpop.f32.mrf.mxu0
      %v947 = vadd.f32 %v231, %v946
      %948 = vdwg.mxu0
      %949 = vmatpush.msra.mxu0 0.0
      %950 = vmatpush.msra.mxu0 0.0
      %951 = vmatpush.msra.mxu0 0.0
      %952 = vmatpush.msra.mxu0 0.0
      %953 = vmatpush.msra.mxu0 0.0
      %954 = vmatpush.msra.mxu0 0.0
      %955 = vmatpush.msra.mxu0 0.0
      %956 = vmatpush.msra.mxu0 0.0
      %957 = vmatpush.msra.mxu0 0.0
      %958 = vmatpush.msra.mxu0 0.0
      %959 = vmatpush.msra.mxu0 0.0
      %960 = vmatpush.msra.mxu0 0.0
      %961 = vmatpush.msra.mxu0 0.0
      %962 = vmatpush.msra.mxu0 0.0
      %963 = vmatpush.msra.mxu0 0.0
      %964 = vmatpush.msra.mxu0 %v363
      %965 = vmatmul.f32.gmra.mxu0 %v302
      %v966 = vpop.f32.mrf.mxu0
      %v967 = vadd.f32 %v231, %v966
      %968 = vdwg.mxu0
      %969 = vmatpush.msra.mxu0 0.0
      %970 = vmatpush.msra.mxu0 0.0
      %971 = vmatpush.msra.mxu0 0.0
      %972 = vmatpush.msra.mxu0 0.0
      %973 = vmatpush.msra.mxu0 0.0
      %974 = vmatpush.msra.mxu0 0.0
      %975 = vmatpush.msra.mxu0 0.0
      %976 = vmatpush.msra.mxu0 0.0
      %977 = vmatpush.msra.mxu0 0.0
      %978 = vmatpush.msra.mxu0 0.0
      %979 = vmatpush.msra.mxu0 0.0
      %980 = vmatpush.msra.mxu0 0.0
      %981 = vmatpush.msra.mxu0 0.0
      %982 = vmatpush.msra.mxu0 0.0
      %983 = vmatpush.msra.mxu0 0.0
      %984 = vmatpush.msra.mxu0 %v365
      %985 = vmatmul.f32.gmra.mxu0 %v302
      %v986 = vpop.f32.mrf.mxu0
      %v987 = vadd.f32 %v231, %v986
      %988 = vdwg.mxu0
      %989 = vmatpush.msra.mxu0 0.0
      %990 = vmatpush.msra.mxu0 0.0
      %991 = vmatpush.msra.mxu0 0.0
      %992 = vmatpush.msra.mxu0 0.0
      %993 = vmatpush.msra.mxu0 0.0
      %994 = vmatpush.msra.mxu0 0.0
      %995 = vmatpush.msra.mxu0 0.0
      %996 = vmatpush.msra.mxu0 0.0
      %997 = vmatpush.msra.mxu0 0.0
      %998 = vmatpush.msra.mxu0 0.0
      %999 = vmatpush.msra.mxu0 0.0
      %1000 = vmatpush.msra.mxu0 0.0
      %1001 = vmatpush.msra.mxu0 0.0
      %1002 = vmatpush.msra.mxu0 0.0
      %1003 = vmatpush.msra.mxu0 0.0
      %1004 = vmatpush.msra.mxu0 %v367
      %1005 = vmatmul.f32.gmra.mxu0 %v302
      %v1006 = vpop.f32.mrf.mxu0
      %v1007 = vadd.f32 %v231, %v1006
      %1008 = vdwg.mxu0
      %v1041 = vrot.slane %v407, 6
      %v1042 = vrot.slane %v427, 4
      %v1043 = vrot.slane %v447, 2
      %v1044 = vrot.slane %v487, 6
      %v1045 = vrot.slane %v507, 4
      %v1046 = vrot.slane %v527, 2
      %v1047 = vrot.slane %v567, 6
      %v1048 = vrot.slane %v587, 4
      %v1049 = vrot.slane %v607, 2
      %v1050 = vrot.slane %v647, 6
      %v1051 = vrot.slane %v667, 4
      %v1052 = vrot.slane %v687, 2
      %v1053 = vrot.slane %v727, 6
      %v1054 = vrot.slane %v747, 4
      %v1055 = vrot.slane %v767, 2
      %v1056 = vrot.slane %v807, 6
      %v1057 = vrot.slane %v827, 4
      %v1058 = vrot.slane %v847, 2
      %v1059 = vrot.slane %v887, 6
      %v1060 = vrot.slane %v907, 4
      %v1061 = vrot.slane %v927, 2
      %v1062 = vrot.slane %v967, 6
      %v1063 = vrot.slane %v987, 4
      %v1064 = vrot.slane %v1007, 2
      %vm1065 = vcmask 1041408
      %v1066 = vsel %vm1065, %v387, %v1041
      %vm1067 = vcmask 1045508
      %v1068 = vsel %vm1067, %v1042, %v1043
      %v1069 = vsel %vm304, %v1066, %v1068
      %v1070 = vsel %vm1065, %v467, %v1044
      %v1071 = vsel %vm1067, %v1045, %v1046
      %v1072 = vsel %vm304, %v1070, %v1071
      %v1073 = vsel %vm1065, %v547, %v1047
      %v1074 = vsel %vm1067, %v1048, %v1049
      %v1075 = vsel %vm304, %v1073, %v1074
      %v1076 = vsel %vm1065, %v627, %v1050
      %v1077 = vsel %vm1067, %v1051, %v1052
      %v1078 = vsel %vm304, %v1076, %v1077
      %v1079 = vsel %vm1065, %v707, %v1053
      %v1080 = vsel %vm1067, %v1054, %v1055
      %v1081 = vsel %vm304, %v1079, %v1080
      %v1082 = vsel %vm1065, %v787, %v1056
      %v1083 = vsel %vm1067, %v1057, %v1058
      %v1084 = vsel %vm304, %v1082, %v1083
      %v1085 = vsel %vm1065, %v867, %v1059
      %v1086 = vsel %vm1067, %v1060, %v1061
      %v1087 = vsel %vm304, %v1085, %v1086
      %v1088 = vsel %vm1065, %v947, %v1062
      %v1089 = vsel %vm1067, %v1063, %v1064
      %v1090 = vsel %vm304, %v1088, %v1089
      %1099 = vst [vmem:[%s208] sm:$0xff] %v1069
      %1100 = vst [vmem:[%s208 + $0x8] sm:$0xff] %v1072
      %1101 = vst [vmem:[%s208 + $0x10] sm:$0xff] %v1075
      %1102 = vst [vmem:[%s208 + $0x18] sm:$0xff] %v1078
      %1103 = vst [vmem:[%s208 + $0x20] sm:$0xff] %v1081
      %1104 = vst [vmem:[%s208 + $0x28] sm:$0xff] %v1084
      %1105 = vst [vmem:[%s208 + $0x30] sm:$0xff] %v1087
      %1106 = vst [vmem:[%s208 + $0x38] sm:$0xff] %v1090
      %s1107 = smul.u32 32, %s19
      %p1108 = scmp.lt.s32.totalorder %s18, 1
      %s1109 = scalar_select %p1108, %s18, 1
      %p1110 = scmp.lt.s32.totalorder %s1107, 31
      %s1111 = scalar_select %p1110, %s1107, 31
      %s1112 = smul.addr %s1109, 32
      %s1113 = sadd.s32 %s1111, %s1112
      %s1114 = smul.addr %s1113, 2
      %s1115 = scalar_lea.vmem %s3, %s1114
      // Predicated region
      $region33: #{out_forward.1} parent=31 // pred_check
        %p1116 = pneg %p116
      $region34: #{out_forward.1} parent=31 // pred_check_branch
        %1118 = sbr.rel (%p1116) target = $region36
      $region35: #{out_forward.1} parent=31 // pred_region
        %s1119 = smul.u32 32, %s19
      $region36: #{out_forward.1} parent=31 // pred_fallthru
        _
    $region32: #{out_forward.1} parent=5 // pred_fallthru
      _
    %p1120 = scmp.le.s32.totalorder 2, %s9
    // Predicated region
    $region37: #{out_forward.1} parent=5 // pred_check
      %p1121 = pneg %p1120
    $region38: #{out_forward.1} parent=5 // pred_check_branch
      %1123 = sbr.rel (%p1121) target = $region40
    $region39: #{out_forward.1} parent=5 // pred_region
      %s1124 = ssub.s32 %s9, 2
      // Predicated region
      $region41: #{out_forward.1} parent=39 // pred_check
        %p1125 = pneg %p122
      $region42: #{out_forward.1} parent=39 // pred_check_branch
        %1127 = sbr.rel (%p1125) target = $region44
      $region43: #{out_forward.1} parent=39 // pred_region
        %s1128 = smul.u32 32, %s21
        %p1129 = scmp.lt.s32.totalorder %s20, 1
        %s1130 = scalar_select %p1129, %s20, 1
        %p1131 = scmp.lt.s32.totalorder %s1128, 31
        %s1132 = scalar_select %p1131, %s1128, 31
        %s1133 = smul.addr %s1130, 32
        %s1134 = sadd.s32 %s1132, %s1133
        %s1135 = smul.addr %s1134, 2
        %s1136 = scalar_lea.vmem %s3, %s1135
      $region44: #{out_forward.1} parent=39 // pred_fallthru
        _
    $region40: #{out_forward.1} parent=5 // pred_fallthru
      _
  $region6: #{out_forward.1} parent=0 // loop_footer
    %s13 = sadd.s32 1, %s9
  $region7: #{out_forward.1} parent=0 // loop_footer_branch
    %8 = sbr.rel target = $region3
  $region8: #{out_forward.1} parent=0 // loop_exit
    _

</llo_original>
